<compile_context>
chip_gen: v6e
topology: v6e:2x2x1
jax: 0.10.0
libtpu: 0.0.40
codegen_flags: <defaults>
</compile_context>

<pallas_src>
import math

import jax
import jax.numpy as jnp
from jax.experimental import pallas as pl
from jax.experimental.pallas import tpu as pltpu


# ------------------------------ Pallas kernel ------------------------------

def _eca_fused_kernel(x_ref, w_ref, o_ref):
    """Fused ECA for a block of nB images.

    x_ref: (nB, C, S) activation block, S = H*W on the lane axis
    w_ref: (C_out, C_in) center tap of the Conv1d weight, f32, VMEM resident
    o_ref: (nB, C, S) gated output, same dtype as x
    """
    # AdaptiveAvgPool2d(1): mean over the spatial (lane) axis, reduced in f32.
    y = jnp.mean(x_ref[...].astype(jnp.float32), axis=-1)            # (nB, C)
    # Conv1d(C, C, k, padding='same', bias=False) on a length-1 sequence:
    # only the center tap contributes -> z[b, o] = sum_i w[o, i] * y[b, i].
    # One batched (nB, C) x (C, C) MXU pass (contract on C_in), f32 accumulate.
    z = jax.lax.dot_general(
        y, w_ref[...],
        dimension_numbers=(((1,), (1,)), ((), ())),
        preferred_element_type=jnp.float32)                           # (nB, C)
    g = jax.nn.sigmoid(z)                                             # (nB, C)
    # Gate: broadcast over the spatial (lane) axis.  Re-read x from VMEM
    # (vld is cheap) and keep the multiply/store in x's native dtype.
    g_x = g.astype(o_ref.dtype)[:, :, None]                           # (nB, C, 1)
    o_ref[...] = (x_ref[...] * g_x).astype(o_ref.dtype)


# ------------------------------ wrapper ------------------------------

def _grid_steps(batch):
    """1 grid step (whole batch) on single-TC chips (v5e/v6e); 2 parallel
    steps on v7x so both TensorCores get work.  Falls back to 1 safely."""
    cores = 1
    try:
        kind = jax.devices()[0].device_kind.lower()
        if "v7" in kind or "7x" in kind:
            cores = 2
    except Exception:
        pass
    steps = max(1, min(cores, batch))
    while batch % steps:
        steps -= 1
    return steps


def eca_forward(x, conv1d_weight):
    """ECANet forward.  x: (B, C, H, W) NCHW.  conv1d_weight: (C, C, k)."""
    B, C, H, W = x.shape
    S = H * W
    k = conv1d_weight.shape[-1]
    # Only the center tap of the 'same'-padded Conv1d touches the length-1
    # post-GAP sequence.  Keep it f32 (16 KiB at C=64): no cast op, no gate
    # perturbation, negligible MXU cost on every generation.
    w_center = conv1d_weight[:, :, k // 2]                  # (C_out, C_in) f32

    x3 = x.reshape(B, C, S)                                 # free NCHW reshape
    n_steps = _grid_steps(B)
    nB = B // n_steps

    # VMEM note (per step, double-buffered in+out): ~4 * nB*C*S*4 bytes.
    # At (64, 16, 16) that's well under 1 MiB -- trivial on all generations.
    # If this module is reused at VGG early-layer sizes (e.g. C=64, 224x224 =>
    # 12.25 MiB/image f32 -> ~49 MiB double-buffered) it exceeds the 32 MiB
    # scoped default on v6e/v7x and nears v7x's 64 MiB *physical* VMEM: tile
    # the spatial axis in the grid or raise vmem_limit_bytes in that case.
    out = pl.pallas_call(
        _eca_fused_kernel,
        out_shape=jax.ShapeDtypeStruct((B, C, S), x.dtype),
        grid=(n_steps,),
        in_specs=[
            pl.BlockSpec((nB, C, S), lambda b: (b, 0, 0)),  # nB images / step
            pl.BlockSpec((C, C), lambda b: (0, 0)),         # weight resident
        ],
        out_specs=pl.BlockSpec((nB, C, S), lambda b: (b, 0, 0)),
        compiler_params=pltpu.CompilerParams(
            dimension_semantics=("parallel",)),             # v7x megacore
        # TODO(synk): add input_output_aliases={0: 0} (same block specs) when
        # x is dead after the ECA block so XLA can donate the activation.
    )(x3, w_center)
    return out.reshape(B, C, H, W)


# ------------------------------ params / reference ------------------------------

def eca_kernel_size(in_channels, b=1, gamma=2):
    k = int(abs((math.log(in_channels, 2) + b) / gamma))
    if k % 2 == 0:
        k += 1
    return k


def init_eca_weight(key, in_channels, b=1, gamma=2):
    k = eca_kernel_size(in_channels, b, gamma)
    bound = 1.0 / math.sqrt(in_channels * k)       # PyTorch Conv1d-style init
    return jax.random.uniform(key, (in_channels, in_channels, k), jnp.float32,
                              minval=-bound, maxval=bound)


def eca_reference(x, conv1d_weight):
    """Pure-JAX reference mirroring the PyTorch module op-for-op."""
    k = conv1d_weight.shape[-1]
    pad = k // 2
    y = jnp.mean(x, axis=(2, 3))                              # AdaptiveAvgPool2d(1)
    yp = jnp.pad(y[:, :, None], ((0, 0), (0, 0), (pad, pad)))  # 'same' padding
    z = jnp.einsum("oit,bit->bo", conv1d_weight, yp)          # Conv1d, length-1
    g = jax.nn.sigmoid(z)[:, :, None, None]
    return x * g


if __name__ == "__main__":
    B, C, H, W = 4, 64, 16, 16
    key = jax.random.PRNGKey(0)
    kx, kw = jax.random.split(key)
    x = jax.random.normal(kx, (B, C, H, W), jnp.float32)
    w = init_eca_weight(kw, C)                                # (64, 64, 3), k=3

    fwd = jax.jit(eca_forward)
    out = jax.block_until_ready(fwd(x, w))

    assert out.shape == (B, C, H, W), out.shape
    assert bool(jnp.all(jnp.isfinite(out)))
    ref = eca_reference(x, w)
    err = float(jnp.max(jnp.abs(out - ref)))
    assert err < 5e-3, f"max abs err {err}"
    print("KERNEL_OK")
</pallas_src>

<mosaic_0001>
module attributes {stable_mosaic.version = 11 : i64} {
  func.func @_eca_fused_kernel(%arg0: i32, %arg1: memref<4x64x256xf32, #tpu.memory_space<vmem>>, %arg2: memref<64x64xf32, #tpu.memory_space<vmem>>, %arg3: memref<4x64x256xf32, #tpu.memory_space<vmem>>) attributes {dimension_semantics = [#tpu.dimension_semantics<parallel>], iteration_bounds = array<i64: 1>, scalar_prefetch = 0 : i64, scratch_operands = 0 : i64, tpu.core_type = #tpu.core_type<tc>, window_params = [{transform_indices = @transform_0, window_bounds = array<i64: 4, 64, 256>}, {pipeline_mode = #tpu.pipeline_mode<synchronous>, transform_indices = @transform_1, window_bounds = array<i64: 64, 64>}, {transform_indices = @transform_2, window_bounds = array<i64: 4, 64, 256>}]} {
    %c0 = arith.constant 0 : index
    %c0_0 = arith.constant 0 : index
    %c0_1 = arith.constant 0 : index
    %0 = vector.load %arg1[%c0, %c0_0, %c0_1] : memref<4x64x256xf32, #tpu.memory_space<vmem>>, vector<4x64x256xf32>
    %cst = arith.constant dense<0.000000e+00> : vector<4x64xf32>
    %1 = vector.multi_reduction <add>, %0, %cst [2] : vector<4x64x256xf32> to vector<4x64xf32>
    %cst_2 = arith.constant 2.560000e+02 : f32
    %2 = vector.broadcast %cst_2 : f32 to vector<4x64xf32>
    %3 = arith.divf %1, %2 : vector<4x64xf32>
    %c0_3 = arith.constant 0 : index
    %c0_4 = arith.constant 0 : index
    %4 = vector.load %arg2[%c0_3, %c0_4] : memref<64x64xf32, #tpu.memory_space<vmem>>, vector<64x64xf32>
    %cst_5 = arith.constant dense<0.000000e+00> : vector<4x64xf32>
    %5 = tpu.matmul %3, %4, %cst_5 {dimension_numbers = #tpu.dot_dimension_numbers<[1], [1], [0], [0], [0, 0, 1, 0], [], []>} : vector<4x64xf32>, vector<64x64xf32>, vector<4x64xf32> -> vector<4x64xf32>
    %6 = arith.negf %5 : vector<4x64xf32>
    %7 = math.exp %6 : vector<4x64xf32>
    %cst_6 = arith.constant 1.000000e+00 : f32
    %8 = vector.broadcast %cst_6 : f32 to vector<4x64xf32>
    %9 = arith.addf %8, %7 : vector<4x64xf32>
    %10 = arith.divf %8, %9 : vector<4x64xf32>
    %11 = vector.shape_cast %10 : vector<4x64xf32> to vector<4x64x1xf32>
    %c0_7 = arith.constant 0 : index
    %c0_8 = arith.constant 0 : index
    %c0_9 = arith.constant 0 : index
    %12 = vector.load %arg1[%c0_7, %c0_8, %c0_9] : memref<4x64x256xf32, #tpu.memory_space<vmem>>, vector<4x64x256xf32>
    %13 = vector.broadcast %11 : vector<4x64x1xf32> to vector<4x64x256xf32>
    %14 = arith.mulf %12, %13 : vector<4x64x256xf32>
    %c0_10 = arith.constant 0 : index
    %c0_11 = arith.constant 0 : index
    %c0_12 = arith.constant 0 : index
    %15 = vector.load %arg3[%c0_10, %c0_11, %c0_12] : memref<4x64x256xf32, #tpu.memory_space<vmem>>, vector<4x64x256xf32>
    tpu.vector_store %arg3[%c0_10, %c0_11, %c0_12], %14 {strides = array<i32>} : memref<4x64x256xf32, #tpu.memory_space<vmem>>, vector<4x64x256xf32>,
    return
  }
  func.func @transform_0(%arg0: i32) -> (i32, i32, i32) {
    %c0_i32 = arith.constant 0 : i32
    %c0_i32_0 = arith.constant 0 : i32
    %c0_i32_1 = arith.constant 0 : i32
    return %arg0, %c0_i32, %c0_i32_0 : i32, i32, i32
  }
  func.func @transform_1(%arg0: i32) -> (i32, i32) {
    %c0_i32 = arith.constant 0 : i32
    %c0_i32_0 = arith.constant 0 : i32
    %c0_i32_1 = arith.constant 0 : i32
    return %c0_i32, %c0_i32_0 : i32, i32
  }
  func.func @transform_2(%arg0: i32) -> (i32, i32, i32) {
    %c0_i32 = arith.constant 0 : i32
    %c0_i32_0 = arith.constant 0 : i32
    %c0_i32_1 = arith.constant 0 : i32
    return %arg0, %c0_i32, %c0_i32_0 : i32, i32, i32
  }
}

</mosaic_0001>

<llo_original>
// kernel: eca_forward.1
$region0: #{eca_forward.1}
  #allocation0 [shape = 'u32[]', space=smem, size = 0x4, offset = 0x4, fixed_abs, tag = 'smem constant byte address 0x4 - core index']
  #allocation1 [shape = 'u32[144,128]{1,0:T(1,128)}', space=vmem, size = 0x12000, scoped, tag = 'internal scratch']
  %s0 = inlined_call_operand.vmem [shape: f32[4,64,256], index: 0, kind: input, shape index: {}]
  %s1 = inlined_call_operand.vmem [shape: f32[64,64], index: 1, kind: input, shape index: {}]
  %s2 = inlined_call_operand.vmem [shape: f32[4,64,256], index: 2, kind: output, shape index: {}]
  %s3 = sld [smem:[#allocation0]]
  $region18: #{eca_forward.1} parent=0
    _
  %s5 = ssub.s32 1, %s3
  %s6 = scalar_select 0, %s5, %s3
  // Predicated region
  $region2: #{eca_forward.1} parent=0 // pred_check
    _
  $region3: #{eca_forward.1} parent=0 // pred_check_branch
    %8 = sbr.rel (0) target = $region5
  $region4: #{eca_forward.1} parent=0 // pred_region
    _
  $region5: #{eca_forward.1} parent=0 // pred_fallthru
    _
  // Predicated region
  $region6: #{eca_forward.1} parent=0 // pred_check
    _
  $region7: #{eca_forward.1} parent=0 // pred_check_branch
    %10 = sbr.rel (0) target = $region9
  $region8: #{eca_forward.1} parent=0 // pred_region
    _
  $region9: #{eca_forward.1} parent=0 // pred_fallthru
    _
  %v11 = vld [vmem:[%s0] sm:$0xff]
  %v12 = vld [vmem:[%s0 + $0x8] sm:$0xff]
  %v13 = vld [vmem:[%s0 + $0x10] sm:$0xff]
  %v14 = vld [vmem:[%s0 + $0x18] sm:$0xff]
  %v15 = vld [vmem:[%s0 + $0x20] sm:$0xff]
  %v16 = vld [vmem:[%s0 + $0x28] sm:$0xff]
  %v17 = vld [vmem:[%s0 + $0x30] sm:$0xff]
  %v18 = vld [vmem:[%s0 + $0x38] sm:$0xff]
  %v19 = vld [vmem:[%s0 + $0x40] sm:$0xff]
  %v20 = vld [vmem:[%s0 + $0x48] sm:$0xff]
  %v21 = vld [vmem:[%s0 + $0x50] sm:$0xff]
  %v22 = vld [vmem:[%s0 + $0x58] sm:$0xff]
  %v23 = vld [vmem:[%s0 + $0x60] sm:$0xff]
  %v24 = vld [vmem:[%s0 + $0x68] sm:$0xff]
  %v25 = vld [vmem:[%s0 + $0x70] sm:$0xff]
  %v26 = vld [vmem:[%s0 + $0x78] sm:$0xff]
  %v27 = vld [vmem:[%s0 + $0x80] sm:$0xff]
  %v28 = vld [vmem:[%s0 + $0x88] sm:$0xff]
  %v29 = vld [vmem:[%s0 + $0x90] sm:$0xff]
  %v30 = vld [vmem:[%s0 + $0x98] sm:$0xff]
  %v31 = vld [vmem:[%s0 + $0xa0] sm:$0xff]
  %v32 = vld [vmem:[%s0 + $0xa8] sm:$0xff]
  %v33 = vld [vmem:[%s0 + $0xb0] sm:$0xff]
  %v34 = vld [vmem:[%s0 + $0xb8] sm:$0xff]
  %v35 = vld [vmem:[%s0 + $0xc0] sm:$0xff]
  %v36 = vld [vmem:[%s0 + $0xc8] sm:$0xff]
  %v37 = vld [vmem:[%s0 + $0xd0] sm:$0xff]
  %v38 = vld [vmem:[%s0 + $0xd8] sm:$0xff]
  %v39 = vld [vmem:[%s0 + $0xe0] sm:$0xff]
  %v40 = vld [vmem:[%s0 + $0xe8] sm:$0xff]
  %v41 = vld [vmem:[%s0 + $0xf0] sm:$0xff]
  %v42 = vld [vmem:[%s0 + $0xf8] sm:$0xff]
  %v43 = vld [vmem:[%s0 + $0x100] sm:$0xff]
  %v44 = vld [vmem:[%s0 + $0x108] sm:$0xff]
  %v45 = vld [vmem:[%s0 + $0x110] sm:$0xff]
  %v46 = vld [vmem:[%s0 + $0x118] sm:$0xff]
  %v47 = vld [vmem:[%s0 + $0x120] sm:$0xff]
  %v48 = vld [vmem:[%s0 + $0x128] sm:$0xff]
  %v49 = vld [vmem:[%s0 + $0x130] sm:$0xff]
  %v50 = vld [vmem:[%s0 + $0x138] sm:$0xff]
  %v51 = vld [vmem:[%s0 + $0x140] sm:$0xff]
  %v52 = vld [vmem:[%s0 + $0x148] sm:$0xff]
  %v53 = vld [vmem:[%s0 + $0x150] sm:$0xff]
  %v54 = vld [vmem:[%s0 + $0x158] sm:$0xff]
  %v55 = vld [vmem:[%s0 + $0x160] sm:$0xff]
  %v56 = vld [vmem:[%s0 + $0x168] sm:$0xff]
  %v57 = vld [vmem:[%s0 + $0x170] sm:$0xff]
  %v58 = vld [vmem:[%s0 + $0x178] sm:$0xff]
  %v59 = vld [vmem:[%s0 + $0x180] sm:$0xff]
  %v60 = vld [vmem:[%s0 + $0x188] sm:$0xff]
  %v61 = vld [vmem:[%s0 + $0x190] sm:$0xff]
  %v62 = vld [vmem:[%s0 + $0x198] sm:$0xff]
  %v63 = vld [vmem:[%s0 + $0x1a0] sm:$0xff]
  %v64 = vld [vmem:[%s0 + $0x1a8] sm:$0xff]
  %v65 = vld [vmem:[%s0 + $0x1b0] sm:$0xff]
  %v66 = vld [vmem:[%s0 + $0x1b8] sm:$0xff]
  %v67 = vld [vmem:[%s0 + $0x1c0] sm:$0xff]
  %v68 = vld [vmem:[%s0 + $0x1c8] sm:$0xff]
  %v69 = vld [vmem:[%s0 + $0x1d0] sm:$0xff]
  %v70 = vld [vmem:[%s0 + $0x1d8] sm:$0xff]
  %v71 = vld [vmem:[%s0 + $0x1e0] sm:$0xff]
  %v72 = vld [vmem:[%s0 + $0x1e8] sm:$0xff]
  %v73 = vld [vmem:[%s0 + $0x1f0] sm:$0xff]
  %v74 = vld [vmem:[%s0 + $0x1f8] sm:$0xff]
  %v75 = vadd.f32 %v11, %v12
  %76 = vadd.xlane.f32.xlu0 %v75
  %v77 = vpop.xlane.xlu0 %76
  %v78 = vadd.f32 %v13, %v14
  %79 = vadd.xlane.f32.xlu0 %v78
  %v80 = vpop.xlane.xlu0 %79
  %v81 = vadd.f32 %v15, %v16
  %82 = vadd.xlane.f32.xlu0 %v81
  %v83 = vpop.xlane.xlu0 %82
  %v84 = vadd.f32 %v17, %v18
  %85 = vadd.xlane.f32.xlu0 %v84
  %v86 = vpop.xlane.xlu0 %85
  %v87 = vadd.f32 %v19, %v20
  %88 = vadd.xlane.f32.xlu0 %v87
  %v89 = vpop.xlane.xlu0 %88
  %v90 = vadd.f32 %v21, %v22
  %91 = vadd.xlane.f32.xlu0 %v90
  %v92 = vpop.xlane.xlu0 %91
  %v93 = vadd.f32 %v23, %v24
  %94 = vadd.xlane.f32.xlu0 %v93
  %v95 = vpop.xlane.xlu0 %94
  %v96 = vadd.f32 %v25, %v26
  %97 = vadd.xlane.f32.xlu0 %v96
  %v98 = vpop.xlane.xlu0 %97
  %v99 = vadd.f32 %v27, %v28
  %100 = vadd.xlane.f32.xlu0 %v99
  %v101 = vpop.xlane.xlu0 %100
  %v102 = vadd.f32 %v29, %v30
  %103 = vadd.xlane.f32.xlu0 %v102
  %v104 = vpop.xlane.xlu0 %103
  %v105 = vadd.f32 %v31, %v32
  %106 = vadd.xlane.f32.xlu0 %v105
  %v107 = vpop.xlane.xlu0 %106
  %v108 = vadd.f32 %v33, %v34
  %109 = vadd.xlane.f32.xlu0 %v108
  %v110 = vpop.xlane.xlu0 %109
  %v111 = vadd.f32 %v35, %v36
  %112 = vadd.xlane.f32.xlu0 %v111
  %v113 = vpop.xlane.xlu0 %112
  %v114 = vadd.f32 %v37, %v38
  %115 = vadd.xlane.f32.xlu0 %v114
  %v116 = vpop.xlane.xlu0 %115
  %v117 = vadd.f32 %v39, %v40
  %118 = vadd.xlane.f32.xlu0 %v117
  %v119 = vpop.xlane.xlu0 %118
  %v120 = vadd.f32 %v41, %v42
  %121 = vadd.xlane.f32.xlu0 %v120
  %v122 = vpop.xlane.xlu0 %121
  %v123 = vadd.f32 %v43, %v44
  %124 = vadd.xlane.f32.xlu0 %v123
  %v125 = vpop.xlane.xlu0 %124
  %v126 = vadd.f32 %v45, %v46
  %127 = vadd.xlane.f32.xlu0 %v126
  %v128 = vpop.xlane.xlu0 %127
  %v129 = vadd.f32 %v47, %v48
  %130 = vadd.xlane.f32.xlu0 %v129
  %v131 = vpop.xlane.xlu0 %130
  %v132 = vadd.f32 %v49, %v50
  %133 = vadd.xlane.f32.xlu0 %v132
  %v134 = vpop.xlane.xlu0 %133
  %v135 = vadd.f32 %v51, %v52
  %136 = vadd.xlane.f32.xlu0 %v135
  %v137 = vpop.xlane.xlu0 %136
  %v138 = vadd.f32 %v53, %v54
  %139 = vadd.xlane.f32.xlu0 %v138
  %v140 = vpop.xlane.xlu0 %139
  %v141 = vadd.f32 %v55, %v56
  %142 = vadd.xlane.f32.xlu0 %v141
  %v143 = vpop.xlane.xlu0 %142
  %v144 = vadd.f32 %v57, %v58
  %145 = vadd.xlane.f32.xlu0 %v144
  %v146 = vpop.xlane.xlu0 %145
  %v147 = vadd.f32 %v59, %v60
  %148 = vadd.xlane.f32.xlu0 %v147
  %v149 = vpop.xlane.xlu0 %148
  %v150 = vadd.f32 %v61, %v62
  %151 = vadd.xlane.f32.xlu0 %v150
  %v152 = vpop.xlane.xlu0 %151
  %v153 = vadd.f32 %v63, %v64
  %154 = vadd.xlane.f32.xlu0 %v153
  %v155 = vpop.xlane.xlu0 %154
  %v156 = vadd.f32 %v65, %v66
  %157 = vadd.xlane.f32.xlu0 %v156
  %v158 = vpop.xlane.xlu0 %157
  %v159 = vadd.f32 %v67, %v68
  %160 = vadd.xlane.f32.xlu0 %v159
  %v161 = vpop.xlane.xlu0 %160
  %v162 = vadd.f32 %v69, %v70
  %163 = vadd.xlane.f32.xlu0 %v162
  %v164 = vpop.xlane.xlu0 %163
  %v165 = vadd.f32 %v71, %v72
  %166 = vadd.xlane.f32.xlu0 %v165
  %v167 = vpop.xlane.xlu0 %166
  %v168 = vadd.f32 %v73, %v74
  %169 = vadd.xlane.f32.xlu0 %v168
  %v170 = vpop.xlane.xlu0 %169
  %v171 = vrcp.pop 256.0
  %v172 = vmul.f32 %v77, %v171
  %v173 = vmul.f32 %v80, %v171
  %v174 = vmul.f32 %v83, %v171
  %v175 = vmul.f32 %v86, %v171
  %v176 = vmul.f32 %v89, %v171
  %v177 = vmul.f32 %v92, %v171
  %v178 = vmul.f32 %v95, %v171
  %v179 = vmul.f32 %v98, %v171
  %v180 = vmul.f32 %v101, %v171
  %v181 = vmul.f32 %v104, %v171
  %v182 = vmul.f32 %v107, %v171
  %v183 = vmul.f32 %v110, %v171
  %v184 = vmul.f32 %v113, %v171
  %v185 = vmul.f32 %v116, %v171
  %v186 = vmul.f32 %v119, %v171
  %v187 = vmul.f32 %v122, %v171
  %v188 = vmul.f32 %v125, %v171
  %v189 = vmul.f32 %v128, %v171
  %v190 = vmul.f32 %v131, %v171
  %v191 = vmul.f32 %v134, %v171
  %v192 = vmul.f32 %v137, %v171
  %v193 = vmul.f32 %v140, %v171
  %v194 = vmul.f32 %v143, %v171
  %v195 = vmul.f32 %v146, %v171
  %v196 = vmul.f32 %v149, %v171
  %v197 = vmul.f32 %v152, %v171
  %v198 = vmul.f32 %v155, %v171
  %v199 = vmul.f32 %v158, %v171
  %v200 = vmul.f32 %v161, %v171
  %v201 = vmul.f32 %v164, %v171
  %v202 = vmul.f32 %v167, %v171
  %v203 = vmul.f32 %v170, %v171
  %v204 = vld [vmem:[%s1] sm:$0xff]
  %v205 = vld [vmem:[%s1 + $0x8] sm:$0xff]
  %v206 = vld [vmem:[%s1 + $0x10] sm:$0xff]
  %v207 = vld [vmem:[%s1 + $0x18] sm:$0xff]
  %v208 = vld [vmem:[%s1 + $0x20] sm:$0xff]
  %v209 = vld [vmem:[%s1 + $0x28] sm:$0xff]
  %v210 = vld [vmem:[%s1 + $0x30] sm:$0xff]
  %v211 = vld [vmem:[%s1 + $0x38] sm:$0xff]
  %v244 = vlaneseq
  %v245 = vand.u32 %v244, 127
  %v246 = vlaneseq
  %v247 = vshrl.u32 %v246, 7
  %v248 = vsub.s32 %v245, %v247
  %v249 = vrot.slane %v172, %v248
  %v250 = vadd.s32 %v245, 4294967288
  %v251 = vlaneseq
  %v252 = vshrl.u32 %v251, 7
  %v253 = vsub.s32 %v250, %v252
  %v254 = vrot.slane %v173, %v253
  %vm255 = vcmask 130112
  %v256 = vsel %vm255, %v254, %v249
  %v257 = vadd.s32 %v245, 4294967280
  %v258 = vlaneseq
  %v259 = vshrl.u32 %v258, 7
  %v260 = vsub.s32 %v257, %v259
  %v261 = vrot.slane %v174, %v260
  %vm262 = vcmask 195712
  %v263 = vsel %vm262, %v261, %v256
  %v264 = vadd.s32 %v245, 4294967272
  %v265 = vlaneseq
  %v266 = vshrl.u32 %v265, 7
  %v267 = vsub.s32 %v264, %v266
  %v268 = vrot.slane %v175, %v267
  %vm269 = vcmask 261312
  %v270 = vsel %vm269, %v268, %v263
  %v271 = vadd.s32 %v245, 4294967264
  %v272 = vlaneseq
  %v273 = vshrl.u32 %v272, 7
  %v274 = vsub.s32 %v271, %v273
  %v275 = vrot.slane %v176, %v274
  %vm276 = vcmask 326912
  %v277 = vsel %vm276, %v275, %v270
  %v278 = vadd.s32 %v245, 4294967256
  %v279 = vlaneseq
  %v280 = vshrl.u32 %v279, 7
  %v281 = vsub.s32 %v278, %v280
  %v282 = vrot.slane %v177, %v281
  %vm283 = vcmask 392512
  %v284 = vsel %vm283, %v282, %v277
  %v285 = vadd.s32 %v245, 4294967248
  %v286 = vlaneseq
  %v287 = vshrl.u32 %v286, 7
  %v288 = vsub.s32 %v285, %v287
  %v289 = vrot.slane %v178, %v288
  %vm290 = vcmask 458112
  %v291 = vsel %vm290, %v289, %v284
  %v292 = vadd.s32 %v245, 4294967240
  %v293 = vlaneseq
  %v294 = vshrl.u32 %v293, 7
  %v295 = vsub.s32 %v292, %v294
  %v296 = vrot.slane %v179, %v295
  %vm297 = vcmask 523712
  %v298 = vsel %vm297, %v296, %v291
  %v299 = vlaneseq
  %v300 = vshrl.u32 %v299, 7
  %v301 = vsub.s32 %v245, %v300
  %v302 = vrot.slane %v180, %v301
  %v303 = vlaneseq
  %v304 = vshrl.u32 %v303, 7
  %v305 = vsub.s32 %v250, %v304
  %v306 = vrot.slane %v181, %v305
  %v307 = vsel %vm255, %v306, %v302
  %v308 = vlaneseq
  %v309 = vshrl.u32 %v308, 7
  %v310 = vsub.s32 %v257, %v309
  %v311 = vrot.slane %v182, %v310
  %v312 = vsel %vm262, %v311, %v307
  %v313 = vlaneseq
  %v314 = vshrl.u32 %v313, 7
  %v315 = vsub.s32 %v264, %v314
  %v316 = vrot.slane %v183, %v315
  %v317 = vsel %vm269, %v316, %v312
  %v318 = vlaneseq
  %v319 = vshrl.u32 %v318, 7
  %v320 = vsub.s32 %v271, %v319
  %v321 = vrot.slane %v184, %v320
  %v322 = vsel %vm276, %v321, %v317
  %v323 = vlaneseq
  %v324 = vshrl.u32 %v323, 7
  %v325 = vsub.s32 %v278, %v324
  %v326 = vrot.slane %v185, %v325
  %v327 = vsel %vm283, %v326, %v322
  %v328 = vlaneseq
  %v329 = vshrl.u32 %v328, 7
  %v330 = vsub.s32 %v285, %v329
  %v331 = vrot.slane %v186, %v330
  %v332 = vsel %vm290, %v331, %v327
  %v333 = vlaneseq
  %v334 = vshrl.u32 %v333, 7
  %v335 = vsub.s32 %v292, %v334
  %v336 = vrot.slane %v187, %v335
  %v337 = vsel %vm297, %v336, %v332
  %v338 = vlaneseq
  %v339 = vshrl.u32 %v338, 7
  %v340 = vsub.s32 %v245, %v339
  %v341 = vrot.slane %v188, %v340
  %v342 = vlaneseq
  %v343 = vshrl.u32 %v342, 7
  %v344 = vsub.s32 %v250, %v343
  %v345 = vrot.slane %v189, %v344
  %v346 = vsel %vm255, %v345, %v341
  %v347 = vlaneseq
  %v348 = vshrl.u32 %v347, 7
  %v349 = vsub.s32 %v257, %v348
  %v350 = vrot.slane %v190, %v349
  %v351 = vsel %vm262, %v350, %v346
  %v352 = vlaneseq
  %v353 = vshrl.u32 %v352, 7
  %v354 = vsub.s32 %v264, %v353
  %v355 = vrot.slane %v191, %v354
  %v356 = vsel %vm269, %v355, %v351
  %v357 = vlaneseq
  %v358 = vshrl.u32 %v357, 7
  %v359 = vsub.s32 %v271, %v358
  %v360 = vrot.slane %v192, %v359
  %v361 = vsel %vm276, %v360, %v356
  %v362 = vlaneseq
  %v363 = vshrl.u32 %v362, 7
  %v364 = vsub.s32 %v278, %v363
  %v365 = vrot.slane %v193, %v364
  %v366 = vsel %vm283, %v365, %v361
  %v367 = vlaneseq
  %v368 = vshrl.u32 %v367, 7
  %v369 = vsub.s32 %v285, %v368
  %v370 = vrot.slane %v194, %v369
  %v371 = vsel %vm290, %v370, %v366
  %v372 = vlaneseq
  %v373 = vshrl.u32 %v372, 7
  %v374 = vsub.s32 %v292, %v373
  %v375 = vrot.slane %v195, %v374
  %v376 = vsel %vm297, %v375, %v371
  %v377 = vlaneseq
  %v378 = vshrl.u32 %v377, 7
  %v379 = vsub.s32 %v245, %v378
  %v380 = vrot.slane %v196, %v379
  %v381 = vlaneseq
  %v382 = vshrl.u32 %v381, 7
  %v383 = vsub.s32 %v250, %v382
  %v384 = vrot.slane %v197, %v383
  %v385 = vsel %vm255, %v384, %v380
  %v386 = vlaneseq
  %v387 = vshrl.u32 %v386, 7
  %v388 = vsub.s32 %v257, %v387
  %v389 = vrot.slane %v198, %v388
  %v390 = vsel %vm262, %v389, %v385
  %v391 = vlaneseq
  %v392 = vshrl.u32 %v391, 7
  %v393 = vsub.s32 %v264, %v392
  %v394 = vrot.slane %v199, %v393
  %v395 = vsel %vm269, %v394, %v390
  %v396 = vlaneseq
  %v397 = vshrl.u32 %v396, 7
  %v398 = vsub.s32 %v271, %v397
  %v399 = vrot.slane %v200, %v398
  %v400 = vsel %vm276, %v399, %v395
  %v401 = vlaneseq
  %v402 = vshrl.u32 %v401, 7
  %v403 = vsub.s32 %v278, %v402
  %v404 = vrot.slane %v201, %v403
  %v405 = vsel %vm283, %v404, %v400
  %v406 = vlaneseq
  %v407 = vshrl.u32 %v406, 7
  %v408 = vsub.s32 %v285, %v407
  %v409 = vrot.slane %v202, %v408
  %v410 = vsel %vm290, %v409, %v405
  %v411 = vlaneseq
  %v412 = vshrl.u32 %v411, 7
  %v413 = vsub.s32 %v292, %v412
  %v414 = vrot.slane %v203, %v413
  %v415 = vsel %vm297, %v414, %v410
  %vm416 = vcmask 1041409
  %v417 = vsel %vm416, %v337, %v298
  %vm418 = vcmask 1042434
  %v419 = vsel %vm418, %v376, %v417
  %vm420 = vcmask 1043459
  %v421 = vsel %vm420, %v415, %v419
  %vm422 = vcmask 523264
  %v423 = vsel %vm422, %v421, 0
  %v426 = vsel %vm422, %v204, 0
  %v429 = vsel %vm422, %v205, 0
  %v432 = vsel %vm422, %v206, 0
  %v435 = vsel %vm422, %v207, 0
  %v438 = vsel %vm422, %v208, 0
  %v441 = vsel %vm422, %v209, 0
  %v444 = vsel %vm422, %v210, 0
  %v447 = vsel %vm422, %v211, 0
  %449 = vmatprep.subr.mxu0 0.0
  %450 = vmatpush1.xpose.msra.mxu0 0.0
  %451 = vmatprep.subr.mxu0 0.0
  %452 = vmatpush1.xpose.msra.mxu0 0.0
  %453 = vmatprep.subr.mxu0 0.0
  %454 = vmatpush1.xpose.msra.mxu0 0.0
  %455 = vmatprep.subr.mxu0 0.0
  %456 = vmatpush1.xpose.msra.mxu0 0.0
  %457 = vmatprep.subr.mxu0 0.0
  %458 = vmatpush1.xpose.msra.mxu0 0.0
  %459 = vmatprep.subr.mxu0 0.0
  %460 = vmatpush1.xpose.msra.mxu0 0.0
  %461 = vmatprep.subr.mxu0 0.0
  %462 = vmatpush1.xpose.msra.mxu0 0.0
  %463 = vmatprep.subr.mxu0 0.0
  %464 = vmatpush1.xpose.msra.mxu0 0.0
  %465 = vmatprep.subr.mxu0 0.0
  %466 = vmatpush1.xpose.msra.mxu0 %v447
  %467 = vmatprep.subr.mxu0 0.0
  %468 = vmatpush1.xpose.msra.mxu0 %v444
  %469 = vmatprep.subr.mxu0 0.0
  %470 = vmatpush1.xpose.msra.mxu0 %v441
  %471 = vmatprep.subr.mxu0 0.0
  %472 = vmatpush1.xpose.msra.mxu0 %v438
  %473 = vmatprep.subr.mxu0 0.0
  %474 = vmatpush1.xpose.msra.mxu0 %v435
  %475 = vmatprep.subr.mxu0 0.0
  %476 = vmatpush1.xpose.msra.mxu0 %v432
  %477 = vmatprep.subr.mxu0 0.0
  %478 = vmatpush1.xpose.msra.mxu0 %v429
  %479 = vmatprep.subr.mxu0 0.0
  %480 = vmatpush1.xpose.msra.mxu0 %v426
  %481 = vmatprep.subr.mxu0 0.0
  %482 = vmatpush2.xpose.msra.mxu0 0.0
  %483 = vmatprep.subr.mxu0 0.0
  %484 = vmatpush2.xpose.msra.mxu0 0.0
  %485 = vmatprep.subr.mxu0 0.0
  %486 = vmatpush2.xpose.msra.mxu0 0.0
  %487 = vmatprep.subr.mxu0 0.0
  %488 = vmatpush2.xpose.msra.mxu0 0.0
  %489 = vmatprep.subr.mxu0 0.0
  %490 = vmatpush2.xpose.msra.mxu0 0.0
  %491 = vmatprep.subr.mxu0 0.0
  %492 = vmatpush2.xpose.msra.mxu0 0.0
  %493 = vmatprep.subr.mxu0 0.0
  %494 = vmatpush2.xpose.msra.mxu0 0.0
  %495 = vmatprep.subr.mxu0 0.0
  %496 = vmatpush2.xpose.msra.mxu0 0.0
  %497 = vmatprep.subr.mxu0 0.0
  %498 = vmatpush2.xpose.msra.mxu0 0.0
  %499 = vmatprep.subr.mxu0 0.0
  %500 = vmatpush2.xpose.msra.mxu0 0.0
  %501 = vmatprep.subr.mxu0 0.0
  %502 = vmatpush2.xpose.msra.mxu0 0.0
  %503 = vmatprep.subr.mxu0 0.0
  %504 = vmatpush2.xpose.msra.mxu0 0.0
  %505 = vmatprep.subr.mxu0 0.0
  %506 = vmatpush2.xpose.msra.mxu0 0.0
  %507 = vmatprep.subr.mxu0 0.0
  %508 = vmatpush2.xpose.msra.mxu0 0.0
  %509 = vmatprep.subr.mxu0 0.0
  %510 = vmatpush2.xpose.msra.mxu0 0.0
  %511 = vmatprep.subr.mxu0 0.0
  %512 = vmatpush2.xpose.msra.mxu0 0.0
  %513 = vmatprep.mubr.f32.mxu0 0.0
  %514 = vmatmul.mubr.f32.gmra.mxu0 %v423
  %v515 = vpop.f32.mrf.mxu0
  %v516 = vadd.f32 0.0, %v515
  %v517 = vpop.f32.mrf.mxu0
  %518 = vdwg.mxu0
  %v519 = vxor.u32 %v516, 2147483648
  %v520 = vmul.f32 %v519, 1.442695
  %v521 = vpow.pop %v520
  %v522 = vadd.f32 %v521, 1.0
  %v523 = vrcp.pop %v522
  %v524 = vmul.f32 1.0, %v523
  %v525 = vlaneseq
  %v526 = vshrl.u32 %v525, 7
  %v527 = vsub.s32 0, %v526
  %v528 = vrot.slane %v524, %v527
  %530 = vbcast.lane.b32.xlu0 %v528, 256
  %v531 = vpop.permute.xlu0 %530
  %s533 = sor.u32 256, 8
  %534 = vbcast.lane.b32.xlu0 %v528, %s533
  %v535 = vpop.permute.xlu0 %534
  %s537 = sor.u32 256, 16
  %538 = vbcast.lane.b32.xlu0 %v528, %s537
  %v539 = vpop.permute.xlu0 %538
  %s541 = sor.u32 256, 24
  %542 = vbcast.lane.b32.xlu0 %v528, %s541
  %v543 = vpop.permute.xlu0 %542
  %s545 = sor.u32 256, 32
  %546 = vbcast.lane.b32.xlu0 %v528, %s545
  %v547 = vpop.permute.xlu0 %546
  %s549 = sor.u32 256, 40
  %550 = vbcast.lane.b32.xlu0 %v528, %s549
  %v551 = vpop.permute.xlu0 %550
  %s553 = sor.u32 256, 48
  %554 = vbcast.lane.b32.xlu0 %v528, %s553
  %v555 = vpop.permute.xlu0 %554
  %s557 = sor.u32 256, 56
  %558 = vbcast.lane.b32.xlu0 %v528, %s557
  %v559 = vpop.permute.xlu0 %558
  %v560 = vlaneseq
  %v561 = vshrl.u32 %v560, 7
  %v562 = vsub.s32 1, %v561
  %v563 = vrot.slane %v524, %v562
  %565 = vbcast.lane.b32.xlu0 %v563, 256
  %v566 = vpop.permute.xlu0 %565
  %s568 = sor.u32 256, 8
  %569 = vbcast.lane.b32.xlu0 %v563, %s568
  %v570 = vpop.permute.xlu0 %569
  %s572 = sor.u32 256, 16
  %573 = vbcast.lane.b32.xlu0 %v563, %s572
  %v574 = vpop.permute.xlu0 %573
  %s576 = sor.u32 256, 24
  %577 = vbcast.lane.b32.xlu0 %v563, %s576
  %v578 = vpop.permute.xlu0 %577
  %s580 = sor.u32 256, 32
  %581 = vbcast.lane.b32.xlu0 %v563, %s580
  %v582 = vpop.permute.xlu0 %581
  %s584 = sor.u32 256, 40
  %585 = vbcast.lane.b32.xlu0 %v563, %s584
  %v586 = vpop.permute.xlu0 %585
  %s588 = sor.u32 256, 48
  %589 = vbcast.lane.b32.xlu0 %v563, %s588
  %v590 = vpop.permute.xlu0 %589
  %s592 = sor.u32 256, 56
  %593 = vbcast.lane.b32.xlu0 %v563, %s592
  %v594 = vpop.permute.xlu0 %593
  %v595 = vlaneseq
  %v596 = vshrl.u32 %v595, 7
  %v597 = vsub.s32 2, %v596
  %v598 = vrot.slane %v524, %v597
  %600 = vbcast.lane.b32.xlu0 %v598, 256
  %v601 = vpop.permute.xlu0 %600
  %s603 = sor.u32 256, 8
  %604 = vbcast.lane.b32.xlu0 %v598, %s603
  %v605 = vpop.permute.xlu0 %604
  %s607 = sor.u32 256, 16
  %608 = vbcast.lane.b32.xlu0 %v598, %s607
  %v609 = vpop.permute.xlu0 %608
  %s611 = sor.u32 256, 24
  %612 = vbcast.lane.b32.xlu0 %v598, %s611
  %v613 = vpop.permute.xlu0 %612
  %s615 = sor.u32 256, 32
  %616 = vbcast.lane.b32.xlu0 %v598, %s615
  %v617 = vpop.permute.xlu0 %616
  %s619 = sor.u32 256, 40
  %620 = vbcast.lane.b32.xlu0 %v598, %s619
  %v621 = vpop.permute.xlu0 %620
  %s623 = sor.u32 256, 48
  %624 = vbcast.lane.b32.xlu0 %v598, %s623
  %v625 = vpop.permute.xlu0 %624
  %s627 = sor.u32 256, 56
  %628 = vbcast.lane.b32.xlu0 %v598, %s627
  %v629 = vpop.permute.xlu0 %628
  %v630 = vlaneseq
  %v631 = vshrl.u32 %v630, 7
  %v632 = vsub.s32 3, %v631
  %v633 = vrot.slane %v524, %v632
  %635 = vbcast.lane.b32.xlu0 %v633, 256
  %v636 = vpop.permute.xlu0 %635
  %s638 = sor.u32 256, 8
  %639 = vbcast.lane.b32.xlu0 %v633, %s638
  %v640 = vpop.permute.xlu0 %639
  %s642 = sor.u32 256, 16
  %643 = vbcast.lane.b32.xlu0 %v633, %s642
  %v644 = vpop.permute.xlu0 %643
  %s646 = sor.u32 256, 24
  %647 = vbcast.lane.b32.xlu0 %v633, %s646
  %v648 = vpop.permute.xlu0 %647
  %s650 = sor.u32 256, 32
  %651 = vbcast.lane.b32.xlu0 %v633, %s650
  %v652 = vpop.permute.xlu0 %651
  %s654 = sor.u32 256, 40
  %655 = vbcast.lane.b32.xlu0 %v633, %s654
  %v656 = vpop.permute.xlu0 %655
  %s658 = sor.u32 256, 48
  %659 = vbcast.lane.b32.xlu0 %v633, %s658
  %v660 = vpop.permute.xlu0 %659
  %s662 = sor.u32 256, 56
  %663 = vbcast.lane.b32.xlu0 %v633, %s662
  %v664 = vpop.permute.xlu0 %663
  %v665 = vmul.f32 %v11, %v531
  %v666 = vmul.f32 %v12, %v531
  %v667 = vmul.f32 %v13, %v535
  %v668 = vmul.f32 %v14, %v535
  %v669 = vmul.f32 %v15, %v539
  %v670 = vmul.f32 %v16, %v539
  %v671 = vmul.f32 %v17, %v543
  %v672 = vmul.f32 %v18, %v543
  %v673 = vmul.f32 %v19, %v547
  %v674 = vmul.f32 %v20, %v547
  %v675 = vmul.f32 %v21, %v551
  %v676 = vmul.f32 %v22, %v551
  %v677 = vmul.f32 %v23, %v555
  %v678 = vmul.f32 %v24, %v555
  %v679 = vmul.f32 %v25, %v559
  %v680 = vmul.f32 %v26, %v559
  %v681 = vmul.f32 %v27, %v566
  %v682 = vmul.f32 %v28, %v566
  %v683 = vmul.f32 %v29, %v570
  %v684 = vmul.f32 %v30, %v570
  %v685 = vmul.f32 %v31, %v574
  %v686 = vmul.f32 %v32, %v574
  %v687 = vmul.f32 %v33, %v578
  %v688 = vmul.f32 %v34, %v578
  %v689 = vmul.f32 %v35, %v582
  %v690 = vmul.f32 %v36, %v582
  %v691 = vmul.f32 %v37, %v586
  %v692 = vmul.f32 %v38, %v586
  %v693 = vmul.f32 %v39, %v590
  %v694 = vmul.f32 %v40, %v590
  %v695 = vmul.f32 %v41, %v594
  %v696 = vmul.f32 %v42, %v594
  %v697 = vmul.f32 %v43, %v601
  %v698 = vmul.f32 %v44, %v601
  %v699 = vmul.f32 %v45, %v605
  %v700 = vmul.f32 %v46, %v605
  %v701 = vmul.f32 %v47, %v609
  %v702 = vmul.f32 %v48, %v609
  %v703 = vmul.f32 %v49, %v613
  %v704 = vmul.f32 %v50, %v613
  %v705 = vmul.f32 %v51, %v617
  %v706 = vmul.f32 %v52, %v617
  %v707 = vmul.f32 %v53, %v621
  %v708 = vmul.f32 %v54, %v621
  %v709 = vmul.f32 %v55, %v625
  %v710 = vmul.f32 %v56, %v625
  %v711 = vmul.f32 %v57, %v629
  %v712 = vmul.f32 %v58, %v629
  %v713 = vmul.f32 %v59, %v636
  %v714 = vmul.f32 %v60, %v636
  %v715 = vmul.f32 %v61, %v640
  %v716 = vmul.f32 %v62, %v640
  %v717 = vmul.f32 %v63, %v644
  %v718 = vmul.f32 %v64, %v644
  %v719 = vmul.f32 %v65, %v648
  %v720 = vmul.f32 %v66, %v648
  %v721 = vmul.f32 %v67, %v652
  %v722 = vmul.f32 %v68, %v652
  %v723 = vmul.f32 %v69, %v656
  %v724 = vmul.f32 %v70, %v656
  %v725 = vmul.f32 %v71, %v660
  %v726 = vmul.f32 %v72, %v660
  %v727 = vmul.f32 %v73, %v664
  %v728 = vmul.f32 %v74, %v664
  %729 = vst [vmem:[%s2] sm:$0xff] %v665
  %730 = vst [vmem:[%s2 + $0x8] sm:$0xff] %v666
  %731 = vst [vmem:[%s2 + $0x10] sm:$0xff] %v667
  %732 = vst [vmem:[%s2 + $0x18] sm:$0xff] %v668
  %733 = vst [vmem:[%s2 + $0x20] sm:$0xff] %v669
  %734 = vst [vmem:[%s2 + $0x28] sm:$0xff] %v670
  %735 = vst [vmem:[%s2 + $0x30] sm:$0xff] %v671
  %736 = vst [vmem:[%s2 + $0x38] sm:$0xff] %v672
  %737 = vst [vmem:[%s2 + $0x40] sm:$0xff] %v673
  %738 = vst [vmem:[%s2 + $0x48] sm:$0xff] %v674
  %739 = vst [vmem:[%s2 + $0x50] sm:$0xff] %v675
  %740 = vst [vmem:[%s2 + $0x58] sm:$0xff] %v676
  %741 = vst [vmem:[%s2 + $0x60] sm:$0xff] %v677
  %742 = vst [vmem:[%s2 + $0x68] sm:$0xff] %v678
  %743 = vst [vmem:[%s2 + $0x70] sm:$0xff] %v679
  %744 = vst [vmem:[%s2 + $0x78] sm:$0xff] %v680
  %745 = vst [vmem:[%s2 + $0x80] sm:$0xff] %v681
  %746 = vst [vmem:[%s2 + $0x88] sm:$0xff] %v682
  %747 = vst [vmem:[%s2 + $0x90] sm:$0xff] %v683
  %748 = vst [vmem:[%s2 + $0x98] sm:$0xff] %v684
  %749 = vst [vmem:[%s2 + $0xa0] sm:$0xff] %v685
  %750 = vst [vmem:[%s2 + $0xa8] sm:$0xff] %v686
  %751 = vst [vmem:[%s2 + $0xb0] sm:$0xff] %v687
  %752 = vst [vmem:[%s2 + $0xb8] sm:$0xff] %v688
  %753 = vst [vmem:[%s2 + $0xc0] sm:$0xff] %v689
  %754 = vst [vmem:[%s2 + $0xc8] sm:$0xff] %v690
  %755 = vst [vmem:[%s2 + $0xd0] sm:$0xff] %v691
  %756 = vst [vmem:[%s2 + $0xd8] sm:$0xff] %v692
  %757 = vst [vmem:[%s2 + $0xe0] sm:$0xff] %v693
  %758 = vst [vmem:[%s2 + $0xe8] sm:$0xff] %v694
  %759 = vst [vmem:[%s2 + $0xf0] sm:$0xff] %v695
  %760 = vst [vmem:[%s2 + $0xf8] sm:$0xff] %v696
  %761 = vst [vmem:[%s2 + $0x100] sm:$0xff] %v697
  %762 = vst [vmem:[%s2 + $0x108] sm:$0xff] %v698
  %763 = vst [vmem:[%s2 + $0x110] sm:$0xff] %v699
  %764 = vst [vmem:[%s2 + $0x118] sm:$0xff] %v700
  %765 = vst [vmem:[%s2 + $0x120] sm:$0xff] %v701
  %766 = vst [vmem:[%s2 + $0x128] sm:$0xff] %v702
  %767 = vst [vmem:[%s2 + $0x130] sm:$0xff] %v703
  %768 = vst [vmem:[%s2 + $0x138] sm:$0xff] %v704
  %769 = vst [vmem:[%s2 + $0x140] sm:$0xff] %v705
  %770 = vst [vmem:[%s2 + $0x148] sm:$0xff] %v706
  %771 = vst [vmem:[%s2 + $0x150] sm:$0xff] %v707
  %772 = vst [vmem:[%s2 + $0x158] sm:$0xff] %v708
  %773 = vst [vmem:[%s2 + $0x160] sm:$0xff] %v709
  %774 = vst [vmem:[%s2 + $0x168] sm:$0xff] %v710
  %775 = vst [vmem:[%s2 + $0x170] sm:$0xff] %v711
  %776 = vst [vmem:[%s2 + $0x178] sm:$0xff] %v712
  %777 = vst [vmem:[%s2 + $0x180] sm:$0xff] %v713
  %778 = vst [vmem:[%s2 + $0x188] sm:$0xff] %v714
  %779 = vst [vmem:[%s2 + $0x190] sm:$0xff] %v715
  %780 = vst [vmem:[%s2 + $0x198] sm:$0xff] %v716
  %781 = vst [vmem:[%s2 + $0x1a0] sm:$0xff] %v717
  %782 = vst [vmem:[%s2 + $0x1a8] sm:$0xff] %v718
  %783 = vst [vmem:[%s2 + $0x1b0] sm:$0xff] %v719
  %784 = vst [vmem:[%s2 + $0x1b8] sm:$0xff] %v720
  %785 = vst [vmem:[%s2 + $0x1c0] sm:$0xff] %v721
  %786 = vst [vmem:[%s2 + $0x1c8] sm:$0xff] %v722
  %787 = vst [vmem:[%s2 + $0x1d0] sm:$0xff] %v723
  %788 = vst [vmem:[%s2 + $0x1d8] sm:$0xff] %v724
  %789 = vst [vmem:[%s2 + $0x1e0] sm:$0xff] %v725
  %790 = vst [vmem:[%s2 + $0x1e8] sm:$0xff] %v726
  %791 = vst [vmem:[%s2 + $0x1f0] sm:$0xff] %v727
  %792 = vst [vmem:[%s2 + $0x1f8] sm:$0xff] %v728
  // Predicated region
  $region10: #{eca_forward.1} parent=0 // pred_check
    _
  $region11: #{eca_forward.1} parent=0 // pred_check_branch
    %794 = sbr.rel (0) target = $region13
  $region12: #{eca_forward.1} parent=0 // pred_region
    _
  $region13: #{eca_forward.1} parent=0 // pred_fallthru
    _
  // Predicated region
  $region14: #{eca_forward.1} parent=0 // pred_check
    _
  $region15: #{eca_forward.1} parent=0 // pred_check_branch
    %796 = sbr.rel (0) target = $region17
  $region16: #{eca_forward.1} parent=0 // pred_region
    _
  $region17: #{eca_forward.1} parent=0 // pred_fallthru
    _

</llo_original>
